<compile_context>
chip_gen: v5e
topology: v5e:2x2
jax: 0.10.0
libtpu: 0.0.40
codegen_flags: <defaults>
</compile_context>

<pallas_src>
import functools

import jax
import jax.numpy as jnp
from jax.experimental import pallas as pl
from jax.experimental.pallas import tpu as pltpu

BN_EPS = 1e-5
NEG_INF = -1e30
LANE = 128


def _round_up(x, m):
    return -(-x // m) * m


# ------------------------------ fused kernel ------------------------------- #

def scmdr_fused_kernel(layout, x_src_ref, x_tgt_ref, label_ref, params_ref,
                       feat_src_ref, feat_tgt_ref, loss_ref):
    """Whole scMDR forward (training, mark=1) in one kernel invocation.

    Inputs : x_src[B,I], x_tgt[B,I], labels[B,1] (int32), packed params [R,128]
    Outputs: feat_src[B,F], feat_tgt[B,F], packed losses [1,128]
             (lane 0 = cls_loss, lane 1 = l1_loss).
    `layout` is a static Python dict of (w_off, fan_in, fan_out, b_off) tuples
    describing where each weight/bias lives inside the packed buffer.
    """

    def linear(x, spec):
        w_off, fan_in, fan_out, b_off = spec
        w = params_ref[pl.ds(w_off, fan_in), pl.ds(0, fan_out)]
        b = params_ref[pl.ds(b_off, 1), pl.ds(0, fan_out)]
        # bf16 operands -> single-pass MXU; accumulate in f32.
        return jnp.dot(x.astype(jnp.bfloat16), w.astype(jnp.bfloat16),
                       preferred_element_type=jnp.float32) + b

    def mlp_layer(x, spec):
        # Linear -> Sigmoid -> BatchNorm1d(affine=False, batch stats,
        # biased two-pass variance, eps=1e-5).  Elementwise math in f32.
        h = jax.nn.sigmoid(linear(x, spec))
        mean = jnp.mean(h, axis=0, keepdims=True)
        c = h - mean
        var = jnp.mean(c * c, axis=0, keepdims=True)
        return c * jax.lax.rsqrt(var + BN_EPS)

    # --------- target branch: mlp4 (sonnet1/2/3 undefined -> identity) ----- #
    h_tgt = x_tgt_ref[...].astype(jnp.float32)
    for spec in layout["mlp4"]:
        h_tgt = mlp_layer(h_tgt, spec)
    feat_tgt_ref[...] = h_tgt.astype(feat_tgt_ref.dtype)
    # pred_tgt_son1/2/3 never feed the returned values -> dead work, omitted.

    # --------- source branch: mlp1 ----------------------------------------- #
    h_src = x_src_ref[...].astype(jnp.float32)
    for spec in layout["mlp1"]:
        h_src = mlp_layer(h_src, spec)
    feat_src_ref[...] = h_src.astype(feat_src_ref.dtype)

    B = h_src.shape[0]

    # --------- classification loss on source (lane-dense padded head) ------ #
    logits = linear(h_src, layout["cls"])                      # [B,128]; pad lanes ~ -1e30
    mlog = jnp.max(logits, axis=1, keepdims=True)
    z = logits - mlog
    lse = jnp.log(jnp.sum(jnp.exp(z), axis=1, keepdims=True))
    logp = z - lse
    lane = jax.lax.broadcasted_iota(jnp.int32, logits.shape, 1)
    onehot = lane == label_ref[...]                             # [B,128] one-hot via labels
    nll_rows = jnp.sum(jnp.where(onehot, logp, 0.0), axis=1, keepdims=True)
    cls = -jnp.sum(nll_rows, axis=0, keepdims=True) / B         # [1,1]

    # l1 loss is structurally zero (identity sonnets -> softmax diff == 0),
    # so no softmax is computed; packed scalar outputs written lane-dense.
    out_lane = jax.lax.broadcasted_iota(jnp.int32, loss_ref.shape, 1)
    loss_ref[...] = jnp.where(out_lane == 0, cls, 0.0).astype(loss_ref.dtype)


# ------------------------------- parameters -------------------------------- #

def init_linear_params(key, fan_in, fan_out):
    kw, kb = jax.random.split(key)
    bound = 1.0 / float(fan_in) ** 0.5
    w = jax.random.uniform(kw, (fan_in, fan_out), jnp.float32, -bound, bound)
    b = jax.random.uniform(kb, (1, fan_out), jnp.float32, -bound, bound)
    return w, b


def init_mlpnet(key, layer_sizes, input_size):
    sizes = [input_size] + list(layer_sizes)
    params = []
    for i in range(len(sizes) - 1):
        key, sub = jax.random.split(key)
        params.append(init_linear_params(sub, sizes[i], sizes[i + 1]))
    return params


def init_scmdr(key, layer_sizes_list, input_size_list, num_classes=5):
    keys = jax.random.split(key, 7)
    return {
        "mlp1": init_mlpnet(keys[0], layer_sizes_list[0], input_size_list[0]),
        "mlp2": init_mlpnet(keys[1], layer_sizes_list[1], input_size_list[1]),
        "mlp3": init_mlpnet(keys[2], layer_sizes_list[2], input_size_list[2]),
        "mlp4": init_mlpnet(keys[3], layer_sizes_list[3], input_size_list[3]),
        "cls_fc1": init_linear_params(keys[4], 128, num_classes),
        "cls_fc2": init_linear_params(keys[5], 128, num_classes),
        "cls_fc3": init_linear_params(keys[6], 128, num_classes),
    }


def pack_scmdr_params(params, num_classes):
    """Done ONCE at init: pack every weight/bias used by the mark=1 forward
    into a single lane-dense [rows, P] f32 buffer (rows padded to multiples of
    8) and pre-pad the classifier head, so the per-step path has a single
    parameter DMA and zero padding ops."""
    widths = [LANE]
    for branch in ("mlp1", "mlp4"):
        widths += [w.shape[1] for w, _ in params[branch]]
    P = _round_up(max(widths), LANE)

    blocks, rows = [], 0

    def add(arr):
        nonlocal rows
        r, c = arr.shape
        off = rows
        pad_r = _round_up(r, 8)
        blocks.append(jnp.zeros((pad_r, P), jnp.float32).at[:r, :c].set(arr))
        rows += pad_r
        return off

    layout = {}
    for branch in ("mlp1", "mlp4"):
        specs = []
        for w, b in params[branch]:
            w_off = add(w)
            b_off = add(b.reshape(1, -1))
            specs.append((w_off, w.shape[0], w.shape[1], b_off))
        layout[branch] = tuple(specs)

    # Lane-dense classifier head: zero-pad weight columns; padded bias lanes
    # get -1e30 so the 128-wide log-softmax ignores them.
    w_cls, b_cls = params["cls_fc1"]   # TODO(synk): cls_fc_son1 undefined -> cls_fc1
    w_pad = jnp.zeros((w_cls.shape[0], P), jnp.float32).at[:, :num_classes].set(w_cls)
    b_pad = jnp.full((1, P), NEG_INF, jnp.float32).at[:, :num_classes].set(
        b_cls.reshape(1, -1))
    cw_off = add(w_pad)
    cb_off = add(b_pad)
    layout["cls"] = (cw_off, w_cls.shape[0], P, cb_off)

    return jnp.concatenate(blocks, axis=0), layout


# --------------------------------- forward --------------------------------- #

def build_scmdr_forward(layout, feat_dim):
    kernel = functools.partial(scmdr_fused_kernel, layout)
    vmem = pltpu.MemorySpace.VMEM

    @jax.jit
    def forward(packed_params, data_src, data_tgt, label_src):
        B = data_src.shape[0]
        labels = label_src.astype(jnp.int32).reshape(B, 1)

        out_shapes = (
            jax.ShapeDtypeStruct((B, feat_dim), jnp.float32),   # feat_src (mlp1 out)
            jax.ShapeDtypeStruct((B, feat_dim), jnp.float32),   # feat_tgt (= data_tgt_son1)
            jax.ShapeDtypeStruct((1, LANE), jnp.float32),       # packed losses
        )
        feat_src, feat_tgt, loss_row = pl.pallas_call(
            kernel,
            out_shape=out_shapes,
            in_specs=[pl.BlockSpec(memory_space=vmem)] * 4,
            out_specs=tuple(pl.BlockSpec(memory_space=vmem) for _ in out_shapes),
        )(data_src.astype(jnp.float32), data_tgt.astype(jnp.float32),
          labels, packed_params)

        cls_loss = loss_row[0, 0]
        l1_loss = loss_row[0, 1] * 0.5     # structurally zero (identity sonnets)
        mmd_loss = jnp.float32(0.0)        # TODO(synk): mmd() undefined in reference
        return cls_loss, mmd_loss, l1_loss, feat_src, feat_tgt

    return forward


# ---------------------------- pure-JAX reference ---------------------------- #

def _reference_forward(params, data_src, data_tgt, label_src):
    def mlpnet(ps, x):
        for w, b in ps:
            h = jax.nn.sigmoid(x @ w + b)
            mean = jnp.mean(h, axis=0, keepdims=True)
            var = jnp.mean((h - mean) ** 2, axis=0, keepdims=True)
            x = (h - mean) / jnp.sqrt(var + BN_EPS)
        return x

    feat_tgt = mlpnet(params["mlp4"], data_tgt)
    feat_src = mlpnet(params["mlp1"], data_src)
    w, b = params["cls_fc1"]
    logits = feat_src @ w + b
    logp = jax.nn.log_softmax(logits, axis=1)
    cls = -jnp.mean(logp[jnp.arange(logits.shape[0]), label_src])
    s = jax.nn.softmax(feat_tgt, axis=1)
    l1 = (jnp.mean(jnp.abs(s - s)) + jnp.mean(jnp.abs(s - s))) / 2.0
    return cls, jnp.float32(0.0), l1, feat_src, feat_tgt


# ----------------------------------- main ----------------------------------- #

if __name__ == "__main__":
    key = jax.random.PRNGKey(0)
    num_classes = 5
    batch = 8
    input_size_list = [32, 32, 32, 32]
    layer_sizes_list = [[64, 128], [64, 128], [64, 128], [64, 128]]

    k_params, k_src, k_tgt, k_lbl = jax.random.split(key, 4)
    params = init_scmdr(k_params, layer_sizes_list, input_size_list, num_classes)
    packed_params, layout = pack_scmdr_params(params, num_classes)
    feat_dim = params["mlp1"][-1][0].shape[1]

    forward = build_scmdr_forward(layout, feat_dim)

    data_src = jax.random.normal(k_src, (batch, input_size_list[0]), jnp.float32)
    data_tgt = jax.random.normal(k_tgt, (batch, input_size_list[3]), jnp.float32)
    label_src = jax.random.randint(k_lbl, (batch,), 0, num_classes)

    outs = jax.block_until_ready(forward(packed_params, data_src, data_tgt, label_src))
    cls_loss, mmd_loss, l1_loss, feat_src, feat_tgt = outs

    # correctness vs pure-f32 JAX reference (kernel uses bf16 MXU operands with
    # f32 accumulation -> slightly looser tolerance).
    ref_cls, _, ref_l1, ref_src, ref_tgt = _reference_forward(
        params, data_src, data_tgt, label_src)

    assert feat_src.shape == (batch, feat_dim) and feat_tgt.shape == (batch, feat_dim)
    assert bool(jnp.isfinite(cls_loss)) and bool(jnp.isfinite(l1_loss))
    assert bool(jnp.allclose(feat_src, ref_src, rtol=3e-2, atol=3e-2))
    assert bool(jnp.allclose(feat_tgt, ref_tgt, rtol=3e-2, atol=3e-2))
    assert bool(jnp.allclose(cls_loss, ref_cls, rtol=2e-2, atol=2e-2))
    assert bool(jnp.allclose(l1_loss, ref_l1, rtol=1e-5, atol=1e-6))
    print("KERNEL_OK")
</pallas_src>

<mosaic_0001>
module attributes {stable_mosaic.version = 11 : i64} {
  func.func @scmdr_fused_kernel(%arg0: memref<8x32xf32, #tpu.memory_space<vmem>>, %arg1: memref<8x32xf32, #tpu.memory_space<vmem>>, %arg2: memref<8x1xi32, #tpu.memory_space<vmem>>, %arg3: memref<360x128xf32, #tpu.memory_space<vmem>>, %arg4: memref<8x128xf32, #tpu.memory_space<vmem>>, %arg5: memref<8x128xf32, #tpu.memory_space<vmem>>, %arg6: memref<1x128xf32, #tpu.memory_space<vmem>>) attributes {dimension_semantics = [], scalar_prefetch = 0 : i64, scratch_operands = 0 : i64, tpu.core_type = #tpu.core_type<tc>} {
    %c0 = arith.constant 0 : index
    %c0_0 = arith.constant 0 : index
    %0 = vector.load %arg1[%c0, %c0_0] : memref<8x32xf32, #tpu.memory_space<vmem>>, vector<8x32xf32>
    %c112 = arith.constant 112 : index
    %c0_1 = arith.constant 0 : index
    %1 = vector.load %arg3[%c112, %c0_1] : memref<360x128xf32, #tpu.memory_space<vmem>>, vector<32x64xf32>
    %c144 = arith.constant 144 : index
    %c0_2 = arith.constant 0 : index
    %2 = vector.load %arg3[%c144, %c0_2] : memref<360x128xf32, #tpu.memory_space<vmem>>, vector<1x64xf32>
    %3 = arith.truncf %0 : vector<8x32xf32> to vector<8x32xbf16>
    %4 = arith.truncf %1 : vector<32x64xf32> to vector<32x64xbf16>
    %cst = arith.constant dense<0.000000e+00> : vector<8x64xf32>
    %5 = tpu.matmul %3, %4, %cst {dimension_numbers = #tpu.dot_dimension_numbers<[1], [0], [0], [1], [0, 0, 1, 1], [], []>} : vector<8x32xbf16>, vector<32x64xbf16>, vector<8x64xf32> -> vector<8x64xf32>
    %6 = vector.broadcast %2 : vector<1x64xf32> to vector<8x64xf32>
    %7 = arith.addf %5, %6 : vector<8x64xf32>
    %8 = arith.negf %7 : vector<8x64xf32>
    %9 = math.exp %8 : vector<8x64xf32>
    %cst_3 = arith.constant 1.000000e+00 : f32
    %10 = vector.broadcast %cst_3 : f32 to vector<8x64xf32>
    %11 = arith.addf %10, %9 : vector<8x64xf32>
    %12 = arith.divf %10, %11 : vector<8x64xf32>
    %cst_4 = arith.constant dense<0.000000e+00> : vector<64xf32>
    %13 = vector.multi_reduction <add>, %12, %cst_4 [0] : vector<8x64xf32> to vector<64xf32>
    %14 = vector.shape_cast %13 : vector<64xf32> to vector<1x64xf32>
    %cst_5 = arith.constant 8.000000e+00 : f32
    %15 = vector.broadcast %cst_5 : f32 to vector<1x64xf32>
    %16 = arith.divf %14, %15 : vector<1x64xf32>
    %17 = vector.broadcast %16 : vector<1x64xf32> to vector<8x64xf32>
    %18 = arith.subf %12, %17 : vector<8x64xf32>
    %19 = arith.mulf %18, %18 : vector<8x64xf32>
    %cst_6 = arith.constant dense<0.000000e+00> : vector<64xf32>
    %20 = vector.multi_reduction <add>, %19, %cst_6 [0] : vector<8x64xf32> to vector<64xf32>
    %21 = vector.shape_cast %20 : vector<64xf32> to vector<1x64xf32>
    %cst_7 = arith.constant 8.000000e+00 : f32
    %22 = vector.broadcast %cst_7 : f32 to vector<1x64xf32>
    %23 = arith.divf %21, %22 : vector<1x64xf32>
    %cst_8 = arith.constant 9.99999974E-6 : f32
    %24 = vector.broadcast %cst_8 : f32 to vector<1x64xf32>
    %25 = arith.addf %23, %24 : vector<1x64xf32>
    %26 = math.rsqrt %25 : vector<1x64xf32>
    %27 = vector.broadcast %26 : vector<1x64xf32> to vector<8x64xf32>
    %28 = arith.mulf %18, %27 : vector<8x64xf32>
    %c152 = arith.constant 152 : index
    %c0_9 = arith.constant 0 : index
    %29 = vector.load %arg3[%c152, %c0_9] : memref<360x128xf32, #tpu.memory_space<vmem>>, vector<64x128xf32>
    %c216 = arith.constant 216 : index
    %c0_10 = arith.constant 0 : index
    %30 = vector.load %arg3[%c216, %c0_10] : memref<360x128xf32, #tpu.memory_space<vmem>>, vector<1x128xf32>
    %31 = arith.truncf %28 : vector<8x64xf32> to vector<8x64xbf16>
    %32 = arith.truncf %29 : vector<64x128xf32> to vector<64x128xbf16>
    %cst_11 = arith.constant dense<0.000000e+00> : vector<8x128xf32>
    %33 = tpu.matmul %31, %32, %cst_11 {dimension_numbers = #tpu.dot_dimension_numbers<[1], [0], [0], [1], [0, 0, 1, 1], [], []>} : vector<8x64xbf16>, vector<64x128xbf16>, vector<8x128xf32> -> vector<8x128xf32>
    %34 = vector.broadcast %30 : vector<1x128xf32> to vector<8x128xf32>
    %35 = arith.addf %33, %34 : vector<8x128xf32>
    %36 = arith.negf %35 : vector<8x128xf32>
    %37 = math.exp %36 : vector<8x128xf32>
    %cst_12 = arith.constant 1.000000e+00 : f32
    %38 = vector.broadcast %cst_12 : f32 to vector<8x128xf32>
    %39 = arith.addf %38, %37 : vector<8x128xf32>
    %40 = arith.divf %38, %39 : vector<8x128xf32>
    %cst_13 = arith.constant dense<0.000000e+00> : vector<128xf32>
    %41 = vector.multi_reduction <add>, %40, %cst_13 [0] : vector<8x128xf32> to vector<128xf32>
    %42 = vector.shape_cast %41 : vector<128xf32> to vector<1x128xf32>
    %cst_14 = arith.constant 8.000000e+00 : f32
    %43 = vector.broadcast %cst_14 : f32 to vector<1x128xf32>
    %44 = arith.divf %42, %43 : vector<1x128xf32>
    %45 = vector.broadcast %44 : vector<1x128xf32> to vector<8x128xf32>
    %46 = arith.subf %40, %45 : vector<8x128xf32>
    %47 = arith.mulf %46, %46 : vector<8x128xf32>
    %cst_15 = arith.constant dense<0.000000e+00> : vector<128xf32>
    %48 = vector.multi_reduction <add>, %47, %cst_15 [0] : vector<8x128xf32> to vector<128xf32>
    %49 = vector.shape_cast %48 : vector<128xf32> to vector<1x128xf32>
    %cst_16 = arith.constant 8.000000e+00 : f32
    %50 = vector.broadcast %cst_16 : f32 to vector<1x128xf32>
    %51 = arith.divf %49, %50 : vector<1x128xf32>
    %cst_17 = arith.constant 9.99999974E-6 : f32
    %52 = vector.broadcast %cst_17 : f32 to vector<1x128xf32>
    %53 = arith.addf %51, %52 : vector<1x128xf32>
    %54 = math.rsqrt %53 : vector<1x128xf32>
    %55 = vector.broadcast %54 : vector<1x128xf32> to vector<8x128xf32>
    %56 = arith.mulf %46, %55 : vector<8x128xf32>
    %c0_18 = arith.constant 0 : index
    %c0_19 = arith.constant 0 : index
    %57 = vector.load %arg5[%c0_18, %c0_19] : memref<8x128xf32, #tpu.memory_space<vmem>>, vector<8x128xf32>
    tpu.vector_store %arg5[%c0_18, %c0_19], %56 {strides = array<i32>} : memref<8x128xf32, #tpu.memory_space<vmem>>, vector<8x128xf32>,
    %c0_20 = arith.constant 0 : index
    %c0_21 = arith.constant 0 : index
    %58 = vector.load %arg0[%c0_20, %c0_21] : memref<8x32xf32, #tpu.memory_space<vmem>>, vector<8x32xf32>
    %c0_22 = arith.constant 0 : index
    %c0_23 = arith.constant 0 : index
    %59 = vector.load %arg3[%c0_22, %c0_23] : memref<360x128xf32, #tpu.memory_space<vmem>>, vector<32x64xf32>
    %c32 = arith.constant 32 : index
    %c0_24 = arith.constant 0 : index
    %60 = vector.load %arg3[%c32, %c0_24] : memref<360x128xf32, #tpu.memory_space<vmem>>, vector<1x64xf32>
    %61 = arith.truncf %58 : vector<8x32xf32> to vector<8x32xbf16>
    %62 = arith.truncf %59 : vector<32x64xf32> to vector<32x64xbf16>
    %cst_25 = arith.constant dense<0.000000e+00> : vector<8x64xf32>
    %63 = tpu.matmul %61, %62, %cst_25 {dimension_numbers = #tpu.dot_dimension_numbers<[1], [0], [0], [1], [0, 0, 1, 1], [], []>} : vector<8x32xbf16>, vector<32x64xbf16>, vector<8x64xf32> -> vector<8x64xf32>
    %64 = vector.broadcast %60 : vector<1x64xf32> to vector<8x64xf32>
    %65 = arith.addf %63, %64 : vector<8x64xf32>
    %66 = arith.negf %65 : vector<8x64xf32>
    %67 = math.exp %66 : vector<8x64xf32>
    %cst_26 = arith.constant 1.000000e+00 : f32
    %68 = vector.broadcast %cst_26 : f32 to vector<8x64xf32>
    %69 = arith.addf %68, %67 : vector<8x64xf32>
    %70 = arith.divf %68, %69 : vector<8x64xf32>
    %cst_27 = arith.constant dense<0.000000e+00> : vector<64xf32>
    %71 = vector.multi_reduction <add>, %70, %cst_27 [0] : vector<8x64xf32> to vector<64xf32>
    %72 = vector.shape_cast %71 : vector<64xf32> to vector<1x64xf32>
    %cst_28 = arith.constant 8.000000e+00 : f32
    %73 = vector.broadcast %cst_28 : f32 to vector<1x64xf32>
    %74 = arith.divf %72, %73 : vector<1x64xf32>
    %75 = vector.broadcast %74 : vector<1x64xf32> to vector<8x64xf32>
    %76 = arith.subf %70, %75 : vector<8x64xf32>
    %77 = arith.mulf %76, %76 : vector<8x64xf32>
    %cst_29 = arith.constant dense<0.000000e+00> : vector<64xf32>
    %78 = vector.multi_reduction <add>, %77, %cst_29 [0] : vector<8x64xf32> to vector<64xf32>
    %79 = vector.shape_cast %78 : vector<64xf32> to vector<1x64xf32>
    %cst_30 = arith.constant 8.000000e+00 : f32
    %80 = vector.broadcast %cst_30 : f32 to vector<1x64xf32>
    %81 = arith.divf %79, %80 : vector<1x64xf32>
    %cst_31 = arith.constant 9.99999974E-6 : f32
    %82 = vector.broadcast %cst_31 : f32 to vector<1x64xf32>
    %83 = arith.addf %81, %82 : vector<1x64xf32>
    %84 = math.rsqrt %83 : vector<1x64xf32>
    %85 = vector.broadcast %84 : vector<1x64xf32> to vector<8x64xf32>
    %86 = arith.mulf %76, %85 : vector<8x64xf32>
    %c40 = arith.constant 40 : index
    %c0_32 = arith.constant 0 : index
    %87 = vector.load %arg3[%c40, %c0_32] : memref<360x128xf32, #tpu.memory_space<vmem>>, vector<64x128xf32>
    %c104 = arith.constant 104 : index
    %c0_33 = arith.constant 0 : index
    %88 = vector.load %arg3[%c104, %c0_33] : memref<360x128xf32, #tpu.memory_space<vmem>>, vector<1x128xf32>
    %89 = arith.truncf %86 : vector<8x64xf32> to vector<8x64xbf16>
    %90 = arith.truncf %87 : vector<64x128xf32> to vector<64x128xbf16>
    %cst_34 = arith.constant dense<0.000000e+00> : vector<8x128xf32>
    %91 = tpu.matmul %89, %90, %cst_34 {dimension_numbers = #tpu.dot_dimension_numbers<[1], [0], [0], [1], [0, 0, 1, 1], [], []>} : vector<8x64xbf16>, vector<64x128xbf16>, vector<8x128xf32> -> vector<8x128xf32>
    %92 = vector.broadcast %88 : vector<1x128xf32> to vector<8x128xf32>
    %93 = arith.addf %91, %92 : vector<8x128xf32>
    %94 = arith.negf %93 : vector<8x128xf32>
    %95 = math.exp %94 : vector<8x128xf32>
    %cst_35 = arith.constant 1.000000e+00 : f32
    %96 = vector.broadcast %cst_35 : f32 to vector<8x128xf32>
    %97 = arith.addf %96, %95 : vector<8x128xf32>
    %98 = arith.divf %96, %97 : vector<8x128xf32>
    %cst_36 = arith.constant dense<0.000000e+00> : vector<128xf32>
    %99 = vector.multi_reduction <add>, %98, %cst_36 [0] : vector<8x128xf32> to vector<128xf32>
    %100 = vector.shape_cast %99 : vector<128xf32> to vector<1x128xf32>
    %cst_37 = arith.constant 8.000000e+00 : f32
    %101 = vector.broadcast %cst_37 : f32 to vector<1x128xf32>
    %102 = arith.divf %100, %101 : vector<1x128xf32>
    %103 = vector.broadcast %102 : vector<1x128xf32> to vector<8x128xf32>
    %104 = arith.subf %98, %103 : vector<8x128xf32>
    %105 = arith.mulf %104, %104 : vector<8x128xf32>
    %cst_38 = arith.constant dense<0.000000e+00> : vector<128xf32>
    %106 = vector.multi_reduction <add>, %105, %cst_38 [0] : vector<8x128xf32> to vector<128xf32>
    %107 = vector.shape_cast %106 : vector<128xf32> to vector<1x128xf32>
    %cst_39 = arith.constant 8.000000e+00 : f32
    %108 = vector.broadcast %cst_39 : f32 to vector<1x128xf32>
    %109 = arith.divf %107, %108 : vector<1x128xf32>
    %cst_40 = arith.constant 9.99999974E-6 : f32
    %110 = vector.broadcast %cst_40 : f32 to vector<1x128xf32>
    %111 = arith.addf %109, %110 : vector<1x128xf32>
    %112 = math.rsqrt %111 : vector<1x128xf32>
    %113 = vector.broadcast %112 : vector<1x128xf32> to vector<8x128xf32>
    %114 = arith.mulf %104, %113 : vector<8x128xf32>
    %c0_41 = arith.constant 0 : index
    %c0_42 = arith.constant 0 : index
    %115 = vector.load %arg4[%c0_41, %c0_42] : memref<8x128xf32, #tpu.memory_space<vmem>>, vector<8x128xf32>
    tpu.vector_store %arg4[%c0_41, %c0_42], %114 {strides = array<i32>} : memref<8x128xf32, #tpu.memory_space<vmem>>, vector<8x128xf32>,
    %c224 = arith.constant 224 : index
    %c0_43 = arith.constant 0 : index
    %116 = vector.load %arg3[%c224, %c0_43] : memref<360x128xf32, #tpu.memory_space<vmem>>, vector<128x128xf32>
    %c352 = arith.constant 352 : index
    %c0_44 = arith.constant 0 : index
    %117 = vector.load %arg3[%c352, %c0_44] : memref<360x128xf32, #tpu.memory_space<vmem>>, vector<1x128xf32>
    %118 = arith.truncf %114 : vector<8x128xf32> to vector<8x128xbf16>
    %119 = arith.truncf %116 : vector<128x128xf32> to vector<128x128xbf16>
    %cst_45 = arith.constant dense<0.000000e+00> : vector<8x128xf32>
    %120 = tpu.matmul %118, %119, %cst_45 {dimension_numbers = #tpu.dot_dimension_numbers<[1], [0], [0], [1], [0, 0, 1, 1], [], []>} : vector<8x128xbf16>, vector<128x128xbf16>, vector<8x128xf32> -> vector<8x128xf32>
    %121 = vector.broadcast %117 : vector<1x128xf32> to vector<8x128xf32>
    %122 = arith.addf %120, %121 : vector<8x128xf32>
    %cst_46 = arith.constant dense<0xFF800000> : vector<8xf32>
    %123 = vector.multi_reduction <maximumf>, %122, %cst_46 [1] : vector<8x128xf32> to vector<8xf32>
    %124 = vector.shape_cast %123 : vector<8xf32> to vector<8x1xf32>
    %125 = vector.broadcast %124 : vector<8x1xf32> to vector<8x128xf32>
    %126 = arith.subf %122, %125 : vector<8x128xf32>
    %127 = math.exp %126 : vector<8x128xf32>
    %cst_47 = arith.constant dense<0.000000e+00> : vector<8xf32>
    %128 = vector.multi_reduction <add>, %127, %cst_47 [1] : vector<8x128xf32> to vector<8xf32>
    %129 = vector.shape_cast %128 : vector<8xf32> to vector<8x1xf32>
    %130 = math.log %129 : vector<8x1xf32>
    %131 = vector.broadcast %130 : vector<8x1xf32> to vector<8x128xf32>
    %132 = arith.subf %126, %131 : vector<8x128xf32>
    %133 = tpu.iota {dimensions = array<i32: 1>} : vector<8x128xi32>
    %c0_48 = arith.constant 0 : index
    %c0_49 = arith.constant 0 : index
    %134 = vector.load %arg2[%c0_48, %c0_49] : memref<8x1xi32, #tpu.memory_space<vmem>>, vector<8x1xi32>
    %135 = vector.broadcast %134 : vector<8x1xi32> to vector<8x128xi32>
    %136 = arith.cmpi eq, %133, %135 : vector<8x128xi32>
    %cst_50 = arith.constant 0.000000e+00 : f32
    %137 = vector.broadcast %cst_50 : f32 to vector<8x128xf32>
    %138 = arith.select %136, %132, %137 : vector<8x128xi1>, vector<8x128xf32>
    %cst_51 = arith.constant dense<0.000000e+00> : vector<8xf32>
    %139 = vector.multi_reduction <add>, %138, %cst_51 [1] : vector<8x128xf32> to vector<8xf32>
    %140 = vector.shape_cast %139 : vector<8xf32> to vector<8x1xf32>
    %cst_52 = arith.constant dense<0.000000e+00> : vector<1xf32>
    %141 = vector.multi_reduction <add>, %140, %cst_52 [0] : vector<8x1xf32> to vector<1xf32>
    %142 = vector.shape_cast %141 : vector<1xf32> to vector<1x1xf32>
    %cst_53 = arith.constant 0.000000e+00 : f32
    %143 = vector.broadcast %cst_53 : f32 to vector<1x1xf32>
    %144 = arith.subf %143, %142 : vector<1x1xf32>
    %cst_54 = arith.constant 8.000000e+00 : f32
    %145 = vector.broadcast %cst_54 : f32 to vector<1x1xf32>
    %146 = arith.divf %144, %145 : vector<1x1xf32>
    %147 = tpu.iota {dimensions = array<i32: 1>} : vector<1x128xi32>
    %c0_i32 = arith.constant 0 : i32
    %148 = vector.broadcast %c0_i32 : i32 to vector<1x128xi32>
    %149 = arith.cmpi eq, %147, %148 : vector<1x128xi32>
    %cst_55 = arith.constant 0.000000e+00 : f32
    %150 = vector.shape_cast %146 : vector<1x1xf32> to vector<1x1xf32>
    %151 = vector.broadcast %150 : vector<1x1xf32> to vector<1x128xf32>
    %152 = vector.broadcast %cst_55 : f32 to vector<1x128xf32>
    %153 = arith.select %149, %151, %152 : vector<1x128xi1>, vector<1x128xf32>
    %c0_56 = arith.constant 0 : index
    %c0_57 = arith.constant 0 : index
    %154 = vector.load %arg6[%c0_56, %c0_57] : memref<1x128xf32, #tpu.memory_space<vmem>>, vector<1x128xf32>
    tpu.vector_store %arg6[%c0_56, %c0_57], %153 {strides = array<i32>} : memref<1x128xf32, #tpu.memory_space<vmem>>, vector<1x128xf32>,
    return
  }
}

</mosaic_0001>

<llo_original>
// kernel: forward.1
$region0: #{forward.1}
  #allocation0 [shape = 'u32[]', space=smem, size = 0x4, offset = 0x4, fixed_abs, tag = 'smem constant byte address 0x4 - core index']
  #allocation1 [shape = 'u32[72,128]{1,0:T(1,128)}', space=vmem, size = 0x9000, scoped, tag = 'internal scratch']
  %s0 = inlined_call_operand.vmem [shape: f32[8,32], index: 0, kind: input, shape index: {}]
  %s1 = inlined_call_operand.hbm [shape: f32[8,32], index: 1, kind: input, shape index: {}]
  %s2 = inlined_call_operand.vmem [shape: s32[8,1], index: 2, kind: input, shape index: {}]
  %s3 = inlined_call_operand.hbm [shape: f32[360,128], index: 3, kind: input, shape index: {}]
  %s4 = inlined_call_operand.hbm [shape: f32[8,128], index: 4, kind: output, shape index: {0}]
  %s5 = inlined_call_operand.hbm [shape: f32[8,128], index: 5, kind: output, shape index: {1}]
  %s6 = inlined_call_operand.vmem [shape: f32[1,128], index: 6, kind: output, shape index: {2}]
  %7 = xla_tuple %s4, %s5, %s6
  %s8 = sld [smem:[#allocation0]]
  $region50: #{forward.1} parent=0
    _
  %s10 = ssub.s32 1, %s8
  %s11 = scalar_select 0, %s10, %s8
  $region1: #{forward.1} parent=0
    #allocation2 [shape = 'u8[4096]{0}', space=vmem, size = 0x1000, scoped, tag = 'input window, operand 1, single buffered']
    #allocation3 [shape = 's32[1]{0}', space=sflag, size = 0x4, scoped, tag = 'scoped memory for forward.1']
    #allocation4 [shape = 's32[1]{0}', space=sflag, size = 0x4, scoped, tag = 'scoped memory for forward.1']
    #allocation5 [shape = 'u8[184320]{0}', space=vmem, size = 0x2d000, scoped, tag = 'input window, operand 3, single buffered']
    #allocation6 [shape = 's32[1]{0}', space=sflag, size = 0x4, scoped, tag = 'scoped memory for forward.1']
    #allocation7 [shape = 'u8[4096]{0}', space=vmem, size = 0x1000, scoped, tag = 'output window, operand 0, single buffered']
    #allocation8 [shape = 'u8[4096]{0}', space=vmem, size = 0x1000, scoped, tag = 'output window, operand 1, single buffered']
    #allocation9 [shape = 's32[1]{0}', space=sflag, size = 0x4, scoped, tag = 'scoped memory for forward.1']
    %12 = vsyncpa [#allocation3], 0
    %13 = vsyncpa [#allocation6], 0
    %14 = vsyncpa [#allocation4], 0
    %15 = vsyncpa [#allocation9], 0
    // Predicated region
    $region2: #{forward.1} parent=1 // pred_check
      _
    $region3: #{forward.1} parent=1 // pred_check_branch
      %17 = sbr.rel (0) target = $region5
    $region4: #{forward.1} parent=1 // pred_region
      _
    $region5: #{forward.1} parent=1 // pred_fallthru
      _
    // Predicated region
    $region6: #{forward.1} parent=1 // pred_check
      _
    $region7: #{forward.1} parent=1 // pred_check_branch
      %19 = sbr.rel (0) target = $region9
    $region8: #{forward.1} parent=1 // pred_region
      %21 = vsyncadd [#allocation3], 0
      %s23 = sshll.u32 %s1, 4
      %s24 = int_to_ptr.hbm [resolvable:$true] %s23
      %s25 = sshll.u32 [#allocation2], 4
      %s26 = int_to_ptr.vmem [resolvable:$true] %s25
      %28 = dma.hbm_to_vmem [thread:$0]  %s24, 128, %s26, [#allocation3]
    $region9: #{forward.1} parent=1 // pred_fallthru
      _
    // Predicated region
    $region10: #{forward.1} parent=1 // pred_check
      _
    $region11: #{forward.1} parent=1 // pred_check_branch
      %30 = sbr.rel (0) target = $region13
    $region12: #{forward.1} parent=1 // pred_region
      _
    $region13: #{forward.1} parent=1 // pred_fallthru
      _
    // Predicated region
    $region14: #{forward.1} parent=1 // pred_check
      _
    $region15: #{forward.1} parent=1 // pred_check_branch
      %32 = sbr.rel (0) target = $region17
    $region16: #{forward.1} parent=1 // pred_region
      %34 = vsyncadd [#allocation6], 0
      %s35 = sshll.u32 %s3, 4
      %s36 = int_to_ptr.hbm [resolvable:$true] %s35
      %s37 = sshll.u32 [#allocation5], 4
      %s38 = int_to_ptr.vmem [resolvable:$true] %s37
      %43 = dma.hbm_to_vmem [thread:$0]  %s36, 5760, %s38, [#allocation6], 128, 128, 8
    $region17: #{forward.1} parent=1 // pred_fallthru
      _
    // Predicated region
    $region18: #{forward.1} parent=1 // pred_check
      _
    $region19: #{forward.1} parent=1 // pred_check_branch
      %45 = sbr.rel (0) target = $region21
    $region20: #{forward.1} parent=1 // pred_region
      %47 = dma.done [#allocation3], 128
    $region21: #{forward.1} parent=1 // pred_fallthru
      _
    // Predicated region
    $region22: #{forward.1} parent=1 // pred_check
      _
    $region23: #{forward.1} parent=1 // pred_check_branch
      %49 = sbr.rel (0) target = $region25
    $region24: #{forward.1} parent=1 // pred_region
      %51 = dma.done [#allocation6], 5760
    $region25: #{forward.1} parent=1 // pred_fallthru
      _
    %v53 = vld [vmem:[#allocation2] sm:$0xff]
    %v54 = vld [vmem:[#allocation5 + $0x70] sm:$0xff]
    %v55 = vld [vmem:[#allocation5 + $0x78] sm:$0xff]
    %v56 = vld [vmem:[#allocation5 + $0x80] sm:$0xff]
    %v57 = vld [vmem:[#allocation5 + $0x88] sm:$0xff]
    %v58 = vld [vmem:[#allocation5 + $0x90] sm:$0x1]
    %v59 = vpack.c.bf16 %v53, %v53
    %v60 = vpack.c.bf16 %v55, %v54
    %v61 = vpack.c.bf16 %v57, %v56
    %v62 = vperm.slane %v58, 0
    %vm63 = vcmask 261120
    %v65 = vsel %vm63, %v59, 0
    %67 = vmatpush.bf16.msra.mxu0 0
    %68 = vmatpush.bf16.msra.mxu0 0
    %69 = vmatpush.bf16.msra.mxu0 0
    %70 = vmatpush.bf16.msra.mxu0 0
    %71 = vmatpush.bf16.msra.mxu0 0
    %72 = vmatpush.bf16.msra.mxu0 0
    %73 = vmatpush.bf16.msra.mxu0 %v61
    %74 = vmatpush.bf16.msra.mxu0 %v60
    %75 = vmatmul.bf16.gmra.mxu0 %v65
    %v76 = vpop.f32.mrf.mxu0
    %v77 = vadd.f32 %v62, %v76
    %v78 = vpop.f32.mrf.mxu0
    %79 = vdwg.mxu0
    %v80 = vxor.u32 %v77, 2147483648
    %v81 = vmul.f32 %v80, 1.442695
    %v82 = vpow.pop %v81
    %v83 = vadd.f32 %v82, 1.0
    %v84 = vrcp.pop %v83
    %v85 = vmul.f32 %v83, %v84
    %v86 = vsub.f32 1.0, %v85
    %v87 = vmul.f32 %v84, %v86
    %v88 = vadd.f32 %v84, %v87
    %vm89 = vweird.f32 %v83
    %vm90 = vweird.f32 %v84
    %vm91 = vmor %vm89, %vm90
    %v92 = vsel %vm91, %v84, %v88
    %v93 = vand.u32 2147483647, %v83
    %vm94 = vcmp.eq.f32.partialorder %v93, 8.507059e+37
    %v95 = vand.u32 %v83, 2147483648
    %v96 = vor.u32 1.1754944e-38, %v95
    %v97 = vsel %vm94, %v96, %v92
    %v98 = vmul.f32 1.0, %v97
    %vm99 = vcmask 523264
    %v100 = vsel %vm99, %v98, 0.0
    %v101 = vrot.slane %v100, 4
    %v102 = vadd.f32 %v100, %v101
    %v103 = vrot.slane %v102, 2
    %v104 = vadd.f32 %v102, %v103
    %v105 = vrot.slane %v104, 1
    %v106 = vadd.f32 %v104, %v105
    %v107 = vrcp.pop 8.0
    %v108 = vmul.f32 8.0, %v107
    %v109 = vsub.f32 1.0, %v108
    %v110 = vmul.f32 %v107, %v109
    %v111 = vadd.f32 %v107, %v110
    %vm112 = vweird.f32 %v107
    %v113 = vsel %vm112, %v107, %v111
    %v114 = vmul.f32 %v106, %v113
    %v115 = vsub.f32 %v98, %v114
    %v116 = vmul.f32 %v115, %v115
    %v117 = vsel %vm99, %v116, 0.0
    %v118 = vrot.slane %v117, 4
    %v119 = vadd.f32 %v117, %v118
    %v120 = vrot.slane %v119, 2
    %v121 = vadd.f32 %v119, %v120
    %v122 = vrot.slane %v121, 1
    %v123 = vadd.f32 %v121, %v122
    %v124 = vmul.f32 %v123, %v113
    %v125 = vadd.f32 %v124, 1e-05
    %v126 = vrsqrt.pop %v125
    %v127 = vmul.f32 %v126, %v125
    %v128 = vmul.f32 %v127, %v126
    %v129 = vmul.f32 0.5, %v128
    %v130 = vsub.f32 1.5, %v129
    %v131 = vmul.f32 %v126, %v130
    %vm132 = vweird.f32 %v125
    %vm133 = vweird.f32 %v126
    %vm134 = vmor %vm132, %vm133
    %v135 = vsel %vm134, %v126, %v131
    %v136 = vmul.f32 %v115, %v135
    %v137 = vld [vmem:[#allocation5 + $0x98] sm:$0xff]
    %v138 = vld [vmem:[#allocation5 + $0xa0] sm:$0xff]
    %v139 = vld [vmem:[#allocation5 + $0xa8] sm:$0xff]
    %v140 = vld [vmem:[#allocation5 + $0xb0] sm:$0xff]
    %v141 = vld [vmem:[#allocation5 + $0xb8] sm:$0xff]
    %v142 = vld [vmem:[#allocation5 + $0xc0] sm:$0xff]
    %v143 = vld [vmem:[#allocation5 + $0xc8] sm:$0xff]
    %v144 = vld [vmem:[#allocation5 + $0xd0] sm:$0xff]
    %v145 = vld [vmem:[#allocation5 + $0xd8] sm:$0x1]
    %v146 = vpack.c.bf16 %v136, %v136
    %v147 = vpack.c.bf16 %v138, %v137
    %v148 = vpack.c.bf16 %v140, %v139
    %v149 = vpack.c.bf16 %v142, %v141
    %v150 = vpack.c.bf16 %v144, %v143
    %v151 = vperm.slane %v145, 0
    %v153 = vsel %vm99, %v146, 0
    %155 = vmatpush.bf16.msra.mxu0 0
    %156 = vmatpush.bf16.msra.mxu0 0
    %157 = vmatpush.bf16.msra.mxu0 0
    %158 = vmatpush.bf16.msra.mxu0 0
    %159 = vmatpush.bf16.msra.mxu0 %v150
    %160 = vmatpush.bf16.msra.mxu0 %v149
    %161 = vmatpush.bf16.msra.mxu0 %v148
    %162 = vmatpush.bf16.msra.mxu0 %v147
    %163 = vmatmul.bf16.gmra.mxu0 %v153
    %v164 = vpop.f32.mrf.mxu0
    %v165 = vadd.f32 %v151, %v164
    %v166 = vpop.f32.mrf.mxu0
    %167 = vdwg.mxu0
    %v168 = vxor.u32 %v165, 2147483648
    %v169 = vmul.f32 %v168, 1.442695
    %v170 = vpow.pop %v169
    %v171 = vadd.f32 %v170, 1.0
    %v172 = vrcp.pop %v171
    %v173 = vmul.f32 %v171, %v172
    %v174 = vsub.f32 1.0, %v173
    %v175 = vmul.f32 %v172, %v174
    %v176 = vadd.f32 %v172, %v175
    %vm177 = vweird.f32 %v171
    %vm178 = vweird.f32 %v172
    %vm179 = vmor %vm177, %vm178
    %v180 = vsel %vm179, %v172, %v176
    %v181 = vand.u32 2147483647, %v171
    %vm182 = vcmp.eq.f32.partialorder %v181, 8.507059e+37
    %v183 = vand.u32 %v171, 2147483648
    %v184 = vor.u32 1.1754944e-38, %v183
    %v185 = vsel %vm182, %v184, %v180
    %v186 = vmul.f32 1.0, %v185
    %v187 = vrot.slane %v186, 4
    %v188 = vadd.f32 %v186, %v187
    %v189 = vrot.slane %v188, 2
    %v190 = vadd.f32 %v188, %v189
    %v191 = vrot.slane %v190, 1
    %v192 = vadd.f32 %v190, %v191
    %v193 = vmul.f32 %v192, %v113
    %v194 = vsub.f32 %v186, %v193
    %v195 = vmul.f32 %v194, %v194
    %v196 = vrot.slane %v195, 4
    %v197 = vadd.f32 %v195, %v196
    %v198 = vrot.slane %v197, 2
    %v199 = vadd.f32 %v197, %v198
    %v200 = vrot.slane %v199, 1
    %v201 = vadd.f32 %v199, %v200
    %v202 = vmul.f32 %v201, %v113
    %v203 = vadd.f32 %v202, 1e-05
    %v204 = vrsqrt.pop %v203
    %v205 = vmul.f32 %v204, %v203
    %v206 = vmul.f32 %v205, %v204
    %v207 = vmul.f32 0.5, %v206
    %v208 = vsub.f32 1.5, %v207
    %v209 = vmul.f32 %v204, %v208
    %vm210 = vweird.f32 %v203
    %vm211 = vweird.f32 %v204
    %vm212 = vmor %vm210, %vm211
    %v213 = vsel %vm212, %v204, %v209
    %v214 = vmul.f32 %v194, %v213
    %215 = vst [vmem:[#allocation8] sm:$0xff] %v214
    %v216 = vld [vmem:[%s0] sm:$0xff]
    %v217 = vld [vmem:[#allocation5] sm:$0xff]
    %v218 = vld [vmem:[#allocation5 + $0x8] sm:$0xff]
    %v219 = vld [vmem:[#allocation5 + $0x10] sm:$0xff]
    %v220 = vld [vmem:[#allocation5 + $0x18] sm:$0xff]
    %v221 = vld [vmem:[#allocation5 + $0x20] sm:$0x1]
    %v222 = vpack.c.bf16 %v216, %v216
    %v223 = vpack.c.bf16 %v218, %v217
    %v224 = vpack.c.bf16 %v220, %v219
    %v225 = vperm.slane %v221, 0
    %v227 = vsel %vm63, %v222, 0
    %229 = vmatpush.bf16.msra.mxu0 0
    %230 = vmatpush.bf16.msra.mxu0 0
    %231 = vmatpush.bf16.msra.mxu0 0
    %232 = vmatpush.bf16.msra.mxu0 0
    %233 = vmatpush.bf16.msra.mxu0 0
    %234 = vmatpush.bf16.msra.mxu0 0
    %235 = vmatpush.bf16.msra.mxu0 %v224
    %236 = vmatpush.bf16.msra.mxu0 %v223
    %237 = vmatmul.bf16.gmra.mxu0 %v227
    %v238 = vpop.f32.mrf.mxu0
    %v239 = vadd.f32 %v225, %v238
    %v240 = vpop.f32.mrf.mxu0
    %241 = vdwg.mxu0
    %v242 = vxor.u32 %v239, 2147483648
    %v243 = vmul.f32 %v242, 1.442695
    %v244 = vpow.pop %v243
    %v245 = vadd.f32 %v244, 1.0
    %v246 = vrcp.pop %v245
    %v247 = vmul.f32 %v245, %v246
    %v248 = vsub.f32 1.0, %v247
    %v249 = vmul.f32 %v246, %v248
    %v250 = vadd.f32 %v246, %v249
    %vm251 = vweird.f32 %v245
    %vm252 = vweird.f32 %v246
    %vm253 = vmor %vm251, %vm252
    %v254 = vsel %vm253, %v246, %v250
    %v255 = vand.u32 2147483647, %v245
    %vm256 = vcmp.eq.f32.partialorder %v255, 8.507059e+37
    %v257 = vand.u32 %v245, 2147483648
    %v258 = vor.u32 1.1754944e-38, %v257
    %v259 = vsel %vm256, %v258, %v254
    %v260 = vmul.f32 1.0, %v259
    %v261 = vsel %vm99, %v260, 0.0
    %v262 = vrot.slane %v261, 4
    %v263 = vadd.f32 %v261, %v262
    %v264 = vrot.slane %v263, 2
    %v265 = vadd.f32 %v263, %v264
    %v266 = vrot.slane %v265, 1
    %v267 = vadd.f32 %v265, %v266
    %v268 = vmul.f32 %v267, %v113
    %v269 = vsub.f32 %v260, %v268
    %v270 = vmul.f32 %v269, %v269
    %v271 = vsel %vm99, %v270, 0.0
    %v272 = vrot.slane %v271, 4
    %v273 = vadd.f32 %v271, %v272
    %v274 = vrot.slane %v273, 2
    %v275 = vadd.f32 %v273, %v274
    %v276 = vrot.slane %v275, 1
    %v277 = vadd.f32 %v275, %v276
    %v278 = vmul.f32 %v277, %v113
    %v279 = vadd.f32 %v278, 1e-05
    %v280 = vrsqrt.pop %v279
    %v281 = vmul.f32 %v280, %v279
    %v282 = vmul.f32 %v281, %v280
    %v283 = vmul.f32 0.5, %v282
    %v284 = vsub.f32 1.5, %v283
    %v285 = vmul.f32 %v280, %v284
    %vm286 = vweird.f32 %v279
    %vm287 = vweird.f32 %v280
    %vm288 = vmor %vm286, %vm287
    %v289 = vsel %vm288, %v280, %v285
    %v290 = vmul.f32 %v269, %v289
    %v291 = vld [vmem:[#allocation5 + $0x28] sm:$0xff]
    %v292 = vld [vmem:[#allocation5 + $0x30] sm:$0xff]
    %v293 = vld [vmem:[#allocation5 + $0x38] sm:$0xff]
    %v294 = vld [vmem:[#allocation5 + $0x40] sm:$0xff]
    %v295 = vld [vmem:[#allocation5 + $0x48] sm:$0xff]
    %v296 = vld [vmem:[#allocation5 + $0x50] sm:$0xff]
    %v297 = vld [vmem:[#allocation5 + $0x58] sm:$0xff]
    %v298 = vld [vmem:[#allocation5 + $0x60] sm:$0xff]
    %v299 = vld [vmem:[#allocation5 + $0x68] sm:$0x1]
    %v300 = vpack.c.bf16 %v290, %v290
    %v301 = vpack.c.bf16 %v292, %v291
    %v302 = vpack.c.bf16 %v294, %v293
    %v303 = vpack.c.bf16 %v296, %v295
    %v304 = vpack.c.bf16 %v298, %v297
    %v305 = vperm.slane %v299, 0
    %v307 = vsel %vm99, %v300, 0
    %309 = vmatpush.bf16.msra.mxu0 0
    %310 = vmatpush.bf16.msra.mxu0 0
    %311 = vmatpush.bf16.msra.mxu0 0
    %312 = vmatpush.bf16.msra.mxu0 0
    %313 = vmatpush.bf16.msra.mxu0 %v304
    %314 = vmatpush.bf16.msra.mxu0 %v303
    %315 = vmatpush.bf16.msra.mxu0 %v302
    %316 = vmatpush.bf16.msra.mxu0 %v301
    %317 = vmatmul.bf16.gmra.mxu0 %v307
    %v318 = vpop.f32.mrf.mxu0
    %v319 = vadd.f32 %v305, %v318
    %v320 = vpop.f32.mrf.mxu0
    %321 = vdwg.mxu0
    %v322 = vxor.u32 %v319, 2147483648
    %v323 = vmul.f32 %v322, 1.442695
    %v324 = vpow.pop %v323
    %v325 = vadd.f32 %v324, 1.0
    %v326 = vrcp.pop %v325
    %v327 = vmul.f32 %v325, %v326
    %v328 = vsub.f32 1.0, %v327
    %v329 = vmul.f32 %v326, %v328
    %v330 = vadd.f32 %v326, %v329
    %vm331 = vweird.f32 %v325
    %vm332 = vweird.f32 %v326
    %vm333 = vmor %vm331, %vm332
    %v334 = vsel %vm333, %v326, %v330
    %v335 = vand.u32 2147483647, %v325
    %vm336 = vcmp.eq.f32.partialorder %v335, 8.507059e+37
    %v337 = vand.u32 %v325, 2147483648
    %v338 = vor.u32 1.1754944e-38, %v337
    %v339 = vsel %vm336, %v338, %v334
    %v340 = vmul.f32 1.0, %v339
    %v341 = vrot.slane %v340, 4
    %v342 = vadd.f32 %v340, %v341
    %v343 = vrot.slane %v342, 2
    %v344 = vadd.f32 %v342, %v343
    %v345 = vrot.slane %v344, 1
    %v346 = vadd.f32 %v344, %v345
    %v347 = vmul.f32 %v346, %v113
    %v348 = vsub.f32 %v340, %v347
    %v349 = vmul.f32 %v348, %v348
    %v350 = vrot.slane %v349, 4
    %v351 = vadd.f32 %v349, %v350
    %v352 = vrot.slane %v351, 2
    %v353 = vadd.f32 %v351, %v352
    %v354 = vrot.slane %v353, 1
    %v355 = vadd.f32 %v353, %v354
    %v356 = vmul.f32 %v355, %v113
    %v357 = vadd.f32 %v356, 1e-05
    %v358 = vrsqrt.pop %v357
    %v359 = vmul.f32 %v358, %v357
    %v360 = vmul.f32 %v359, %v358
    %v361 = vmul.f32 0.5, %v360
    %v362 = vsub.f32 1.5, %v361
    %v363 = vmul.f32 %v358, %v362
    %vm364 = vweird.f32 %v357
    %vm365 = vweird.f32 %v358
    %vm366 = vmor %vm364, %vm365
    %v367 = vsel %vm366, %v358, %v363
    %v368 = vmul.f32 %v348, %v367
    %369 = vst [vmem:[#allocation7] sm:$0xff] %v368
    %v370 = vld [vmem:[#allocation5 + $0xe0] sm:$0xff]
    %v371 = vld [vmem:[#allocation5 + $0xe8] sm:$0xff]
    %v372 = vld [vmem:[#allocation5 + $0xf0] sm:$0xff]
    %v373 = vld [vmem:[#allocation5 + $0xf8] sm:$0xff]
    %v374 = vld [vmem:[#allocation5 + $0x100] sm:$0xff]
    %v375 = vld [vmem:[#allocation5 + $0x108] sm:$0xff]
    %v376 = vld [vmem:[#allocation5 + $0x110] sm:$0xff]
    %v377 = vld [vmem:[#allocation5 + $0x118] sm:$0xff]
    %v378 = vld [vmem:[#allocation5 + $0x120] sm:$0xff]
    %v379 = vld [vmem:[#allocation5 + $0x128] sm:$0xff]
    %v380 = vld [vmem:[#allocation5 + $0x130] sm:$0xff]
    %v381 = vld [vmem:[#allocation5 + $0x138] sm:$0xff]
    %v382 = vld [vmem:[#allocation5 + $0x140] sm:$0xff]
    %v383 = vld [vmem:[#allocation5 + $0x148] sm:$0xff]
    %v384 = vld [vmem:[#allocation5 + $0x150] sm:$0xff]
    %v385 = vld [vmem:[#allocation5 + $0x158] sm:$0xff]
    %v386 = vld [vmem:[#allocation5 + $0x160] sm:$0x1]
    %v387 = vpack.c.bf16 %v368, %v368
    %v388 = vpack.c.bf16 %v371, %v370
    %v389 = vpack.c.bf16 %v373, %v372
    %v390 = vpack.c.bf16 %v375, %v374
    %v391 = vpack.c.bf16 %v377, %v376
    %v392 = vpack.c.bf16 %v379, %v378
    %v393 = vpack.c.bf16 %v381, %v380
    %v394 = vpack.c.bf16 %v383, %v382
    %v395 = vpack.c.bf16 %v385, %v384
    %v396 = vperm.slane %v386, 0
    %397 = vmatpush.bf16.msra.mxu0 %v395
    %398 = vmatpush.bf16.msra.mxu0 %v394
    %399 = vmatpush.bf16.msra.mxu0 %v393
    %400 = vmatpush.bf16.msra.mxu0 %v392
    %401 = vmatpush.bf16.msra.mxu0 %v391
    %402 = vmatpush.bf16.msra.mxu0 %v390
    %403 = vmatpush.bf16.msra.mxu0 %v389
    %404 = vmatpush.bf16.msra.mxu0 %v388
    %405 = vmatmul.bf16.gmra.mxu0 %v387
    %v406 = vpop.f32.mrf.mxu0
    %v407 = vadd.f32 %v396, %v406
    %v408 = vpop.f32.mrf.mxu0
    %409 = vdwg.mxu0
    %410 = vmax.xlane.f32.xlu0 %v407
    %v411 = vpop.xlane.xlu0 %410
    %v412 = vsub.f32 %v407, %v411
    %v413 = vmul.f32 %v412, 1.442695
    %v414 = vpow.pop %v413
    %415 = vadd.xlane.f32.xlu0 %v414
    %v416 = vpop.xlane.xlu0 %415
    %v417 = vlog2.pop %v416
    %v418 = vmul.f32 %v417, 0.6931472
    %v419 = vsub.f32 %v412, %v418
    %v420 = vlaneseq
    %v421 = vand.u32 %v420, 127
    %v422 = vld [vmem:[%s2] sm:$0xff]
    %423 = vset.pattern.permute.xlu0 0
    %424 = vperm.xlu0 %423, %v422
    %v425 = vpop.permute.xlu0 %424
    %vm426 = vcmp.eq.s32.totalorder %v421, %v425
    %v427 = vsel %vm426, %v419, 0.0
    %428 = vadd.xlane.f32.xlu0 %v427
    %v429 = vpop.xlane.xlu0 %428
    %v430 = vrot.slane %v429, 4
    %v431 = vadd.f32 %v429, %v430
    %v432 = vrot.slane %v431, 2
    %v433 = vadd.f32 %v431, %v432
    %v434 = vrot.slane %v433, 1
    %v435 = vadd.f32 %v433, %v434
    %v436 = vsub.f32 0.0, %v435
    %v437 = vmul.f32 %v436, %v113
    %vm438 = vcmp.eq.s32.totalorder %v421, 0
    %v439 = vsel %vm438, %v437, 0.0
    %440 = vst [vmem:[%s6] sm:$0x1] %v439
    // Predicated region
    $region26: #{forward.1} parent=1 // pred_check
      _
    $region27: #{forward.1} parent=1 // pred_check_branch
      %442 = sbr.rel (0) target = $region29
    $region28: #{forward.1} parent=1 // pred_region
      %444 = vsyncadd [#allocation4], 0
      %s446 = sshll.u32 [#allocation7], 4
      %s447 = int_to_ptr.vmem [resolvable:$true] %s446
      %s448 = sshll.u32 %s4, 4
      %s449 = int_to_ptr.hbm [resolvable:$true] %s448
      %451 = dma.vmem_to_hbm [thread:$0]  %s447, 128, %s449, [#allocation4]
    $region29: #{forward.1} parent=1 // pred_fallthru
      _
    // Predicated region
    $region30: #{forward.1} parent=1 // pred_check
      _
    $region31: #{forward.1} parent=1 // pred_check_branch
      %453 = sbr.rel (0) target = $region33
    $region32: #{forward.1} parent=1 // pred_region
      %455 = vsyncadd [#allocation9], 0
      %s457 = sshll.u32 [#allocation8], 4
      %s458 = int_to_ptr.vmem [resolvable:$true] %s457
      %s459 = sshll.u32 %s5, 4
      %s460 = int_to_ptr.hbm [resolvable:$true] %s459
      %462 = dma.vmem_to_hbm [thread:$0]  %s458, 128, %s460, [#allocation9]
    $region33: #{forward.1} parent=1 // pred_fallthru
      _
    // Predicated region
    $region34: #{forward.1} parent=1 // pred_check
      _
    $region35: #{forward.1} parent=1 // pred_check_branch
      %464 = sbr.rel (0) target = $region37
    $region36: #{forward.1} parent=1 // pred_region
      _
    $region37: #{forward.1} parent=1 // pred_fallthru
      _
    // Predicated region
    $region38: #{forward.1} parent=1 // pred_check
      _
    $region39: #{forward.1} parent=1 // pred_check_branch
      %466 = sbr.rel (0) target = $region41
    $region40: #{forward.1} parent=1 // pred_region
      %468 = dma.done [#allocation4], 128
    $region41: #{forward.1} parent=1 // pred_fallthru
      _
    // Predicated region
    $region42: #{forward.1} parent=1 // pred_check
      _
    $region43: #{forward.1} parent=1 // pred_check_branch
      %470 = sbr.rel (0) target = $region45
    $region44: #{forward.1} parent=1 // pred_region
      %472 = dma.done [#allocation9], 128
    $region45: #{forward.1} parent=1 // pred_fallthru
      _
    // Predicated region
    $region46: #{forward.1} parent=1 // pred_check
      _
    $region47: #{forward.1} parent=1 // pred_check_branch
      %474 = sbr.rel (0) target = $region49
    $region48: #{forward.1} parent=1 // pred_region
      _
    $region49: #{forward.1} parent=1 // pred_fallthru
      _
    %475 = vsyncpa [#allocation3], 1
    %476 = vsyncpa [#allocation6], 1
    %477 = vsyncpa [#allocation4], 1
    %478 = vsyncpa [#allocation9], 1

</llo_original>
